<compile_context>
chip_gen: v5e
topology: v5e:2x2
jax: 0.10.0
libtpu: 0.0.40
codegen_flags: <defaults>
</compile_context>

<pallas_src>
import math

import jax
import jax.numpy as jnp
from jax.experimental import pallas as pl
from jax.experimental.pallas import tpu as pltpu


def _round_up(x, m):
    return ((x + m - 1) // m) * m


def _num_tensorcores():
    """Best-effort TensorCores-per-chip (2 on v7x, 1 on v5e/v6e)."""
    try:
        info = pltpu.get_tpu_info()
        for attr in ("num_cores", "core_count", "num_tensorcores", "tensorcore_count"):
            v = getattr(info, attr, None)
            if isinstance(v, int) and 1 <= v <= 8:
                return v
    except Exception:
        pass
    try:
        kind = jax.devices()[0].device_kind.lower()
        if "v7" in kind or "7x" in kind:
            return 2
    except Exception:
        pass
    return 1


def _make_mse_partial_kernel(tm, rows, acc_rows, needs_mask):
    """Kernel over a (tm, 128) block; accumulates into a resident (acc_rows, 128) output.

    Grid: (parts, steps). Axis 0 is parallel (independent partial sums), axis 1 is the
    in-part reduction (output block index constant across it -> resident accumulator).
    """

    def kernel(x_ref, y_ref, o_ref):
        s = pl.program_id(1)

        @pl.when(s == 0)
        def _init():
            o_ref[...] = jnp.zeros_like(o_ref)

        # Inputs stream in their native dtype (e.g. bf16); upcast per block in VMEM.
        d = x_ref[...].astype(jnp.float32) - y_ref[...].astype(jnp.float32)
        sq = d * d

        if needs_mask:
            # The last block overruns the slab; OOB rows hold undefined VMEM data.
            blk = pl.program_id(0) * pl.num_programs(1) + s
            row_ids = blk * tm + jax.lax.broadcasted_iota(jnp.int32, (tm, 128), 0)
            sq = jnp.where(row_ids < rows, sq, 0.0)

        # Fold rows into acc_rows independent vreg accumulation chains (VPU only;
        # the expensive cross-lane reduce happens once, wrapper-side, on the tiny output).
        o_ref[...] += jnp.sum(sq.reshape(-1, acc_rows, 128), axis=0)

    return kernel


def pallas_mse(x, y, *, target_block_rows=2048):
    """nn.MSELoss()-equivalent (mean reduction) over 1-D vectors via Pallas.

    x, y: 1-D arrays of the same length N (any float dtype).  Returns a scalar float32.
    """
    assert x.shape == y.shape and x.ndim == 1
    N = x.shape[0]
    lanes = 128
    rows = pl.cdiv(N, lanes)

    def as_slab(v):
        # Free bitcast when N % 128 == 0 (the common case).  Otherwise only the ragged
        # lane tail (< 128 elems) is zero-padded, which contributes 0 to the sum.
        # TODO(synk): a 1-D BlockSpec + in-kernel lane mask would avoid this copy too.
        if N % lanes != 0:
            v = jnp.pad(v, (0, rows * lanes - N))
        return v.reshape(rows, lanes)

    xs = as_slab(x)
    ys = as_slab(y)

    # Block rows: multiple of 8, capped at target (~1 MiB f32 per input block).
    tm = min(_round_up(target_block_rows, 8), _round_up(rows, 8))
    total_blocks = pl.cdiv(rows, tm)

    # Split the reduction across TensorCores (v7x) when the block count divides evenly;
    # shave tm a little if needed so it does (guarantees no fully-out-of-bounds block).
    num_parts = 1
    tc = _num_tensorcores()
    if tc > 1 and total_blocks >= 2:
        if total_blocks % tc != 0:
            step_dn = 64 if (tm % 64 == 0 and tm > 64) else 8
            for cand in range(tm - step_dn, max(8, tm // 2) - 1, -step_dn):
                if pl.cdiv(rows, cand) % tc == 0:
                    tm = cand
                    total_blocks = pl.cdiv(rows, cand)
                    break
        if total_blocks % tc == 0:
            num_parts = tc
    steps = total_blocks // num_parts

    acc_rows = 64 if (tm % 64 == 0) else 8          # 8 chains on big blocks, 1 on tiny ones
    needs_mask = (total_blocks * tm) > rows

    kernel = _make_mse_partial_kernel(tm, rows, acc_rows, needs_mask)

    bytes_in = int(N) * (x.dtype.itemsize + y.dtype.itemsize)
    bytes_out = num_parts * acc_rows * 128 * 4

    partials = pl.pallas_call(
        kernel,
        out_shape=jax.ShapeDtypeStruct((num_parts * acc_rows, 128), jnp.float32),
        grid_spec=pltpu.PrefetchScalarGridSpec(
            num_scalar_prefetch=0,
            grid=(num_parts, steps),
            in_specs=[
                pl.BlockSpec((tm, 128), lambda p, s: (p * steps + s, 0)),
                pl.BlockSpec((tm, 128), lambda p, s: (p * steps + s, 0)),
            ],
            out_specs=pl.BlockSpec((acc_rows, 128), lambda p, s: (p, 0)),
        ),
        compiler_params=pltpu.CompilerParams(
            dimension_semantics=("parallel", "arbitrary")),
        cost_estimate=pl.CostEstimate(
            flops=3 * int(N),
            transcendentals=0,
            bytes_accessed=bytes_in + bytes_out),
    )(xs, ys)

    # Single cheap cross-lane reduce of the tiny partial-sum tensor; mean over true N.
    return jnp.sum(partials) / jnp.float32(N)


def max_n_percent_forward(inp, target, percent, sub_function=pallas_mse):
    """JAX/Pallas port of MaxNpercent.forward for 1-D input/target (sub_function = MSE)."""
    N = inp.shape[0]
    n = math.ceil(percent * float(N))
    if n == 0:
        # torch: [:0] -> empty selection -> MSE over an empty tensor is NaN.
        return jnp.float32(jnp.nan)
    # torch's [:n] slices the size-1 leading dim of the argsort result, so for any
    # n >= 1 the selection is a full permutation; MSE is permutation-invariant, so the
    # argsort + gathers are skipped (identical result, far cheaper).
    return sub_function(inp, target)


def _torch_path_reference(x, t, percent):
    """Pure-JAX reference reproducing the exact torch path."""
    N = x.shape[0]
    n = math.ceil(percent * float(N))
    diff = (t - x)[None, :]                                   # torch.diff of stacked
    idx = jnp.argsort(diff, axis=-1, descending=True)[:n]     # [:n] on size-1 dim
    return jnp.mean((x[idx] - t[idx]) ** 2)


if __name__ == "__main__":
    key = jax.random.PRNGKey(0)
    percent = 0.25  # module hyper-parameter; n = ceil(0.25 * N)

    ok = True
    for N in (1024, 2560):   # 128-aligned case + block-overrun (masked) case
        k1, k2, key = jax.random.split(key, 3)
        x = jax.random.normal(k1, (N,), dtype=jnp.float32)
        t = jax.random.normal(k2, (N,), dtype=jnp.float32)

        loss = max_n_percent_forward(x, t, percent, sub_function=pallas_mse)
        loss = jax.block_until_ready(loss)

        ref = _torch_path_reference(x, t, percent)
        if not jnp.allclose(loss, ref, rtol=1e-5, atol=1e-5):
            ok = False
            print("MISMATCH", N, loss, ref)

    if ok:
        print("KERNEL_OK")
</pallas_src>

<mosaic_0001>
module attributes {stable_mosaic.version = 11 : i64} {
  func.func @kernel(%arg0: i32, %arg1: i32, %arg2: memref<8x128xf32, #tpu.memory_space<vmem>>, %arg3: memref<8x128xf32, #tpu.memory_space<vmem>>, %arg4: memref<8x128xf32, #tpu.memory_space<vmem>>) attributes {dimension_semantics = [#tpu.dimension_semantics<parallel>, #tpu.dimension_semantics<arbitrary>], iteration_bounds = array<i64: 1, 1>, scalar_prefetch = 0 : i64, scratch_operands = 0 : i64, tpu.core_type = #tpu.core_type<tc>, window_params = [{transform_indices = @transform_0, window_bounds = array<i64: 8, 128>}, {transform_indices = @transform_1, window_bounds = array<i64: 8, 128>}, {transform_indices = @transform_2, window_bounds = array<i64: 8, 128>}]} {
    %c0_i32 = arith.constant 0 : i32
    %0 = arith.cmpi eq, %arg1, %c0_i32 : i32
    %1 = arith.extui %0 : i1 to i32
    %c0_i32_0 = arith.constant 0 : i32
    %2 = arith.cmpi ne, %1, %c0_i32_0 : i32
    scf.if %2 {
      %cst_8 = arith.constant 0.000000e+00 : f32
      %12 = vector.broadcast %cst_8 : f32 to vector<8x128xf32>
      %c0_9 = arith.constant 0 : index
      %c0_10 = arith.constant 0 : index
      %13 = vector.load %arg4[%c0_9, %c0_10] : memref<8x128xf32, #tpu.memory_space<vmem>>, vector<8x128xf32>
      tpu.vector_store %arg4[%c0_9, %c0_10], %12 {strides = array<i32>} : memref<8x128xf32, #tpu.memory_space<vmem>>, vector<8x128xf32>,
    } else {
    }
    %c0 = arith.constant 0 : index
    %c0_1 = arith.constant 0 : index
    %3 = vector.load %arg2[%c0, %c0_1] : memref<8x128xf32, #tpu.memory_space<vmem>>, vector<8x128xf32>
    %c0_2 = arith.constant 0 : index
    %c0_3 = arith.constant 0 : index
    %4 = vector.load %arg3[%c0_2, %c0_3] : memref<8x128xf32, #tpu.memory_space<vmem>>, vector<8x128xf32>
    %5 = arith.subf %3, %4 : vector<8x128xf32>
    %6 = arith.mulf %5, %5 : vector<8x128xf32>
    %c0_4 = arith.constant 0 : index
    %c0_5 = arith.constant 0 : index
    %7 = vector.load %arg4[%c0_4, %c0_5] : memref<8x128xf32, #tpu.memory_space<vmem>>, vector<8x128xf32>
    %8 = vector.shape_cast %6 : vector<8x128xf32> to vector<1x8x128xf32>
    %cst = arith.constant dense<0.000000e+00> : vector<8x128xf32>
    %9 = vector.multi_reduction <add>, %8, %cst [0] : vector<1x8x128xf32> to vector<8x128xf32>
    %10 = arith.addf %7, %9 : vector<8x128xf32>
    %c0_6 = arith.constant 0 : index
    %c0_7 = arith.constant 0 : index
    %11 = vector.load %arg4[%c0_6, %c0_7] : memref<8x128xf32, #tpu.memory_space<vmem>>, vector<8x128xf32>
    tpu.vector_store %arg4[%c0_6, %c0_7], %10 {strides = array<i32>} : memref<8x128xf32, #tpu.memory_space<vmem>>, vector<8x128xf32>,
    return
  }
  func.func @transform_0(%arg0: i32, %arg1: i32) -> (i32, i32) {
    %c1_i32 = arith.constant 1 : i32
    %0 = arith.muli %arg0, %c1_i32 : i32
    %1 = arith.addi %0, %arg1 : i32
    %c0_i32 = arith.constant 0 : i32
    %c0_i32_0 = arith.constant 0 : i32
    return %1, %c0_i32 : i32, i32
  }
  func.func @transform_1(%arg0: i32, %arg1: i32) -> (i32, i32) {
    %c1_i32 = arith.constant 1 : i32
    %0 = arith.muli %arg0, %c1_i32 : i32
    %1 = arith.addi %0, %arg1 : i32
    %c0_i32 = arith.constant 0 : i32
    %c0_i32_0 = arith.constant 0 : i32
    return %1, %c0_i32 : i32, i32
  }
  func.func @transform_2(%arg0: i32, %arg1: i32) -> (i32, i32) {
    %c0_i32 = arith.constant 0 : i32
    %c0_i32_0 = arith.constant 0 : i32
    return %arg0, %c0_i32 : i32, i32
  }
}

</mosaic_0001>

<llo_original>
// kernel: tpu_custom_call.1
$region0: #{tpu_custom_call.1}
  #allocation0 [shape = 'u32[]', space=smem, size = 0x4, offset = 0x4, fixed_abs, tag = 'smem constant byte address 0x4 - core index']
  #allocation1 [shape = 'u32[72,128]{1,0:T(1,128)}', space=vmem, size = 0x9000, scoped, tag = 'internal scratch']
  %s0 = inlined_call_operand.hbm [shape: f32[8,128], index: 0, kind: input, shape index: {}]
  %s1 = inlined_call_operand.hbm [shape: f32[8,128], index: 1, kind: input, shape index: {}]
  %s2 = inlined_call_operand.hbm [shape: f32[8,128], index: 2, kind: output, shape index: {}]
  %s3 = sld [smem:[#allocation0]]
  $region30: #{tpu_custom_call.1} parent=0
    _
  %s5 = ssub.s32 1, %s3
  %s6 = scalar_select 0, %s5, %s3
  $region1: #{tpu_custom_call.1} parent=0
    #allocation2 [shape = 'u8[4096]{0}', space=vmem, size = 0x1000, scoped, tag = 'input window, operand 0, single buffered']
    #allocation3 [shape = 's32[1]{0}', space=sflag, size = 0x4, scoped, tag = 'scoped memory for tpu_custom_call.1']
    #allocation4 [shape = 's32[1]{0}', space=sflag, size = 0x4, scoped, tag = 'scoped memory for tpu_custom_call.1']
    #allocation5 [shape = 'u8[4096]{0}', space=vmem, size = 0x1000, scoped, tag = 'input window, operand 1, single buffered']
    #allocation6 [shape = 's32[1]{0}', space=sflag, size = 0x4, scoped, tag = 'scoped memory for tpu_custom_call.1']
    #allocation7 [shape = 'u8[4096]{0}', space=vmem, size = 0x1000, scoped, tag = 'output window, operand 0, single buffered']
    %7 = vsyncpa [#allocation3], 0
    %8 = vsyncpa [#allocation6], 0
    %9 = vsyncpa [#allocation4], 0
    // Predicated region
    $region2: #{tpu_custom_call.1} parent=1 // pred_check
      _
    $region3: #{tpu_custom_call.1} parent=1 // pred_check_branch
      %11 = sbr.rel (0) target = $region5
    $region4: #{tpu_custom_call.1} parent=1 // pred_region
      %s12 = sadd.s32 0, 0
      %14 = vsyncadd [#allocation3], 0
      %s15 = smul.addr %s12, 8
      %s16 = scalar_lea.hbm %s0, %s15
      %s18 = sshll.u32 %s16, 4
      %s19 = int_to_ptr.hbm [resolvable:$true] %s18
      %s20 = sshll.u32 [#allocation2], 4
      %s21 = int_to_ptr.vmem [resolvable:$true] %s20
      %23 = dma.hbm_to_vmem [thread:$0]  %s19, 128, %s21, [#allocation3]
    $region5: #{tpu_custom_call.1} parent=1 // pred_fallthru
      _
    // Predicated region
    $region6: #{tpu_custom_call.1} parent=1 // pred_check
      _
    $region7: #{tpu_custom_call.1} parent=1 // pred_check_branch
      %25 = sbr.rel (0) target = $region9
    $region8: #{tpu_custom_call.1} parent=1 // pred_region
      %s26 = sadd.s32 0, 0
      %28 = vsyncadd [#allocation6], 0
      %s29 = smul.addr %s26, 8
      %s30 = scalar_lea.hbm %s1, %s29
      %s32 = sshll.u32 %s30, 4
      %s33 = int_to_ptr.hbm [resolvable:$true] %s32
      %s34 = sshll.u32 [#allocation5], 4
      %s35 = int_to_ptr.vmem [resolvable:$true] %s34
      %37 = dma.hbm_to_vmem [thread:$0]  %s33, 128, %s35, [#allocation6]
    $region9: #{tpu_custom_call.1} parent=1 // pred_fallthru
      _
    // Predicated region
    $region10: #{tpu_custom_call.1} parent=1 // pred_check
      _
    $region11: #{tpu_custom_call.1} parent=1 // pred_check_branch
      %39 = sbr.rel (0) target = $region13
    $region12: #{tpu_custom_call.1} parent=1 // pred_region
      %41 = dma.done [#allocation3], 128
    $region13: #{tpu_custom_call.1} parent=1 // pred_fallthru
      _
    // Predicated region
    $region14: #{tpu_custom_call.1} parent=1 // pred_check
      _
    $region15: #{tpu_custom_call.1} parent=1 // pred_check_branch
      %43 = sbr.rel (0) target = $region17
    $region16: #{tpu_custom_call.1} parent=1 // pred_region
      %45 = dma.done [#allocation6], 128
    $region17: #{tpu_custom_call.1} parent=1 // pred_fallthru
      _
    %s46 = sadd.s32 0, 0
    %s47 = sadd.s32 0, 0
    %p48 = scmp.eq.s32.totalorder 0, 0
    // Predicated region
    $region18: #{tpu_custom_call.1} parent=1 // pred_check
      %p49 = pneg %p48
    $region19: #{tpu_custom_call.1} parent=1 // pred_check_branch
      %51 = sbr.rel (%p49) target = $region21
    $region20: #{tpu_custom_call.1} parent=1 // pred_region
      %52 = vst [vmem:[#allocation7] sm:$0xff] 0.0
    $region21: #{tpu_custom_call.1} parent=1 // pred_fallthru
      _
    %v53 = vld [vmem:[#allocation2] sm:$0xff]
    %v54 = vld [vmem:[#allocation5] sm:$0xff]
    %v55 = vsub.f32 %v53, %v54
    %v56 = vmul.f32 %v55, %v55
    %v57 = vld [vmem:[#allocation7] sm:$0xff]
    %v58 = vadd.f32 %v56, 0.0
    %v59 = vadd.f32 %v57, %v58
    %60 = vst [vmem:[#allocation7] sm:$0xff] %v59
    // Predicated region
    $region22: #{tpu_custom_call.1} parent=1 // pred_check
      _
    $region23: #{tpu_custom_call.1} parent=1 // pred_check_branch
      %62 = sbr.rel (0) target = $region25
    $region24: #{tpu_custom_call.1} parent=1 // pred_region
      %64 = vsyncadd [#allocation4], 0
      %s66 = sshll.u32 [#allocation7], 4
      %s67 = int_to_ptr.vmem [resolvable:$true] %s66
      %s68 = sshll.u32 %s2, 4
      %s69 = int_to_ptr.hbm [resolvable:$true] %s68
      %71 = dma.vmem_to_hbm [thread:$0]  %s67, 128, %s69, [#allocation4]
    $region25: #{tpu_custom_call.1} parent=1 // pred_fallthru
      _
    // Predicated region
    $region26: #{tpu_custom_call.1} parent=1 // pred_check
      _
    $region27: #{tpu_custom_call.1} parent=1 // pred_check_branch
      %73 = sbr.rel (0) target = $region29
    $region28: #{tpu_custom_call.1} parent=1 // pred_region
      %75 = dma.done [#allocation4], 128
    $region29: #{tpu_custom_call.1} parent=1 // pred_fallthru
      _
    %76 = vsyncpa [#allocation3], 1
    %77 = vsyncpa [#allocation6], 1
    %78 = vsyncpa [#allocation4], 1

</llo_original>
